<compile_context>
chip_gen: v7x
topology: tpu7x:2x2x1
jax: 0.10.0
libtpu: 0.0.40
codegen_flags: <defaults>
</compile_context>

<pallas_src>
import jax
import jax.numpy as jnp
from jax.experimental import pallas as pl
from jax.experimental.pallas import tpu as pltpu

SIGMA = 4.0  # default sigma of gaussian_kernel (feature and spatial)


# -----------------------------------------------------------------------------
# Pallas kernel: FHDF hot path, Bblk images per grid step
# -----------------------------------------------------------------------------
def _fhdf_kernel(guide_ref, x_ref, clus_ref, ad_ref, omega_ref, o_ref):
    # guide_ref: (Bblk, F, P) VMEM   x_ref:    (Bblk, 1, P) VMEM
    # clus_ref:  (Bblk, K, F) VMEM   ad_ref:   (Bblk, K, K) VMEM
    # omega_ref: (P, P)       VMEM   o_ref:    (Bblk, 1, P) VMEM
    bblk, F, P = guide_ref.shape
    K = ad_ref.shape[1]

    # Full-image spatial gaussian as a single (P, P) matrix (kron(ah, aw)).
    # Scrub non-finite garbage that may sit in physical pad cells so it can
    # never reach the MXU contraction.
    omega = omega_ref[...]
    omega = jnp.where(jnp.abs(omega) < 1e30, omega, 0.0)

    outs = []
    for b in range(bblk):                                   # unrolled, bblk <= 8
        g = guide_ref[b]                                    # (F, P)
        xb = x_ref[b]                                       # (1, P)
        cl = clus_ref[b]                                    # (K, F)
        ad = ad_ref[b]                                      # (K, K)

        # phi_k(p) = exp(-||g(p) - c_k||^2 / sigma), vectorized over (K, P).
        # F is tiny, so the squared distance is F broadcasted VPU ops and one
        # EUP exp over the whole slab (exact f32, no scalar-SMEM chains).
        sq = None
        for f in range(F):
            d = g[f:f + 1, :] - cl[:, f:f + 1]              # (K, P)
            sq = d * d if sq is None else sq + d * d
        phi = jnp.exp(sq * (-1.0 / SIGMA))                  # (K, P)

        # ck = pinv(A) @ phi : one small MXU matmul.
        ck = jnp.dot(ad, phi, preferred_element_type=jnp.float32)       # (K, P)

        # Spatial filtering of all 2K slabs (phi_k and phi_k * x) with ONE
        # MXU matmul against omega (symmetric, so right-multiply == conv).
        y = jnp.concatenate([phi, phi * xb], axis=0)        # (2K, P)
        y = jnp.where(jnp.abs(y) < 1e30, y, 0.0)            # keep pads finite
        z = jnp.dot(y, omega, preferred_element_type=jnp.float32)       # (2K, P)
        rk = z[:K]                                          # (K, P)
        vk = z[K:]                                          # (K, P)

        den = jnp.sum(ck * rk, axis=0, keepdims=True)       # (1, P)
        num = jnp.sum(ck * vk, axis=0, keepdims=True)       # (1, P)

        # EUP reciprocal + one Newton step (keeps full f32 accuracy).
        r = pl.reciprocal(den, approx=True)
        r = r * (2.0 - den * r)
        outs.append(num * r)                                # (1, P)

    o_ref[...] = jnp.stack(outs, axis=0)                    # (Bblk, 1, P)


def _pick_batch_block(B):
    # Amortize per-grid-step overhead over several images, but keep >= 2 grid
    # steps when possible so both TensorCores get work on v7x.
    for cand in (8, 4, 2):
        if B % cand == 0 and B // cand >= 2:
            return cand
    return 1


def _pallas_forward(x, guide, clus_t, ad, omega):
    B, F, H, W = guide.shape
    P = H * W
    K = clus_t.shape[1]
    bblk = _pick_batch_block(B)

    guide_f = guide.reshape(B, F, P)      # lane-dense: H*W on the lane axis
    x_f = x.reshape(B, 1, P)

    out = pl.pallas_call(
        _fhdf_kernel,
        out_shape=jax.ShapeDtypeStruct((B, 1, P), jnp.float32),
        grid=(B // bblk,),
        in_specs=[
            pl.BlockSpec((bblk, F, P), lambda b: (b, 0, 0)),
            pl.BlockSpec((bblk, 1, P), lambda b: (b, 0, 0)),
            pl.BlockSpec((bblk, K, F), lambda b: (b, 0, 0)),
            pl.BlockSpec((bblk, K, K), lambda b: (b, 0, 0)),
            pl.BlockSpec((P, P), lambda b: (0, 0)),
        ],
        out_specs=pl.BlockSpec((bblk, 1, P), lambda b: (b, 0, 0)),
        compiler_params=pltpu.CompilerParams(dimension_semantics=("parallel",)),
    )(guide_f, x_f, clus_t, ad, omega)
    return out.reshape(B, H, W)


# -----------------------------------------------------------------------------
# Plain-JAX glue: clustering, pinverse, separable spatial kernel factors
# -----------------------------------------------------------------------------
def _kmeans_lloyd(xf, K, iters=10):
    # xf: (B, F, P) -> cluster centers (B, F, K)
    # TODO(synk): the reference `kmeans` is not executable as written
    # (Tensor.nonzeros, invalid broadcasts); deterministic Lloyd iterations
    # with evenly spaced initial centers are used instead.
    B, F, P = xf.shape
    idx = (jnp.arange(K) * P) // K
    centers = xf[:, :, idx]                                           # (B, F, K)
    for _ in range(iters):
        d = jnp.sum((xf[:, :, :, None] - centers[:, :, None, :]) ** 2, axis=1)
        assign = jnp.argmin(d, axis=-1)                                # (B, P)
        onehot = jax.nn.one_hot(assign, K, dtype=xf.dtype)             # (B, P, K)
        counts = jnp.sum(onehot, axis=1)                               # (B, K)
        sums = jnp.einsum('bfp,bpk->bfk', xf, onehot)
        centers = jnp.where(counts[:, None, :] > 0,
                            sums / jnp.maximum(counts[:, None, :], 1.0),
                            centers)
    return centers


def _spatial_factor(n, sigma):
    # 1D factor of the separable spatial gaussian conv with kernel size n,
    # padding n // 2 (n odd): A[i, y] = exp(-(i - y)^2 / sigma), |i - y| <= n//2.
    i = jnp.arange(n)
    d = (i[:, None] - i[None, :]).astype(jnp.float32)
    return jnp.where(jnp.abs(d) <= n // 2, jnp.exp(-(d * d) / sigma), 0.0)


def _build_params(guide, n_clusters, sigma=SIGMA):
    B, F, H, W = guide.shape
    gf = guide.reshape(B, F, H * W)
    centers = _kmeans_lloyd(gf, n_clusters)                            # (B, F, K)
    clus_t = jnp.transpose(centers, (0, 2, 1))                         # (B, K, F)
    cd = centers[:, :, :, None] - centers[:, :, None, :]               # (B, F, K, K)
    A = jnp.exp(-jnp.sum(cd * cd, axis=1) / sigma)                     # (B, K, K)
    Ad = jnp.linalg.pinv(A)                                            # (B, K, K)
    ah = _spatial_factor(H, sigma)                                     # (H, H) symmetric
    aw = _spatial_factor(W, sigma)                                     # (W, W) symmetric
    return clus_t, Ad, ah, aw


def fhdf2d(x, guide, n_clusters=8):
    clus_t, Ad, ah, aw = _build_params(guide, n_clusters)
    omega = jnp.kron(ah, aw)                                           # (H*W, H*W)
    return _pallas_forward(x.astype(jnp.float32), guide.astype(jnp.float32),
                           clus_t.astype(jnp.float32), Ad.astype(jnp.float32),
                           omega.astype(jnp.float32))


def fhdf2d_reference(x, guide, n_clusters=8):
    # Pure-JAX reference (same math, no Pallas) for validation.
    clus_t, Ad, ah, aw = _build_params(guide, n_clusters)
    hi = jax.lax.Precision.HIGHEST
    diff = guide[:, None, :, :, :] - clus_t[:, :, :, None, None]       # (B,K,F,H,W)
    phi = jnp.exp(-jnp.sum(diff * diff, axis=2) / SIGMA)               # (B,K,H,W)
    ck = jnp.einsum('bkl,blhw->bkhw', Ad, phi, precision=hi)
    phif = phi * x                                                     # x: (B,1,H,W)
    rk = jnp.einsum('ih,bkhw,wj->bkij', ah, phi, aw, precision=hi)
    vk = jnp.einsum('ih,bkhw,wj->bkij', ah, phif, aw, precision=hi)
    den = jnp.sum(ck * rk, axis=1)
    num = jnp.sum(ck * vk, axis=1)
    return num / den


if __name__ == "__main__":
    key = jax.random.PRNGKey(0)
    B, F, H, W, K = 2, 2, 15, 15, 8          # odd H, W so the "same" conv is exact
    k1, k2 = jax.random.split(key)
    x = jax.random.uniform(k1, (B, 1, H, W), dtype=jnp.float32)
    guide = jax.random.uniform(k2, (B, F, H, W), dtype=jnp.float32) * 2.0

    out = jax.block_until_ready(fhdf2d(x, guide, n_clusters=K))
    assert out.shape == (B, H, W), out.shape

    ref = jax.block_until_ready(fhdf2d_reference(x, guide, n_clusters=K))
    rel_err = float(jnp.max(jnp.abs(out - ref)) / (jnp.max(jnp.abs(ref)) + 1e-6))
    if not (rel_err < 1e-2):
        raise AssertionError(f"mismatch vs reference: rel_err={rel_err}")

    print("KERNEL_OK")
</pallas_src>

<mosaic_0001>
module attributes {stable_mosaic.version = 11 : i64} {
  func.func @_fhdf_kernel(%arg0: i32, %arg1: memref<1x2x225xf32, #tpu.memory_space<vmem>>, %arg2: memref<1x1x225xf32, #tpu.memory_space<vmem>>, %arg3: memref<1x8x2xf32, #tpu.memory_space<vmem>>, %arg4: memref<1x8x8xf32, #tpu.memory_space<vmem>>, %arg5: memref<225x225xf32, #tpu.memory_space<vmem>>, %arg6: memref<1x1x225xf32, #tpu.memory_space<vmem>>) attributes {dimension_semantics = [#tpu.dimension_semantics<parallel>], iteration_bounds = array<i64: 2>, scalar_prefetch = 0 : i64, scratch_operands = 0 : i64, tpu.core_type = #tpu.core_type<tc>, window_params = [{transform_indices = @transform_0, window_bounds = array<i64: 1, 2, 225>}, {transform_indices = @transform_1, window_bounds = array<i64: 1, 1, 225>}, {transform_indices = @transform_2, window_bounds = array<i64: 1, 8, 2>}, {transform_indices = @transform_3, window_bounds = array<i64: 1, 8, 8>}, {pipeline_mode = #tpu.pipeline_mode<synchronous>, transform_indices = @transform_4, window_bounds = array<i64: 225, 225>}, {transform_indices = @transform_5, window_bounds = array<i64: 1, 1, 225>}]} {
    %c0 = arith.constant 0 : index
    %c0_0 = arith.constant 0 : index
    %0 = vector.load %arg5[%c0, %c0_0] : memref<225x225xf32, #tpu.memory_space<vmem>>, vector<225x225xf32>
    %1 = math.absf %0 : vector<225x225xf32>
    %cst = arith.constant 1.000000e+30 : f32
    %2 = vector.broadcast %cst : f32 to vector<225x225xf32>
    %3 = arith.cmpf olt, %1, %2 : vector<225x225xf32>
    %cst_1 = arith.constant 0.000000e+00 : f32
    %4 = vector.broadcast %cst_1 : f32 to vector<225x225xf32>
    %5 = arith.select %3, %0, %4 : vector<225x225xi1>, vector<225x225xf32>
    %c0_2 = arith.constant 0 : index
    %c0_3 = arith.constant 0 : index
    %c0_4 = arith.constant 0 : index
    %6 = vector.load %arg1[%c0_2, %c0_3, %c0_4] : memref<1x2x225xf32, #tpu.memory_space<vmem>>, vector<1x2x225xf32>
    %7 = vector.shape_cast %6 : vector<1x2x225xf32> to vector<2x225xf32>
    %c0_5 = arith.constant 0 : index
    %c0_6 = arith.constant 0 : index
    %c0_7 = arith.constant 0 : index
    %8 = vector.load %arg2[%c0_5, %c0_6, %c0_7] : memref<1x1x225xf32, #tpu.memory_space<vmem>>, vector<1x1x225xf32>
    %9 = vector.shape_cast %8 : vector<1x1x225xf32> to vector<1x225xf32>
    %c0_8 = arith.constant 0 : index
    %c0_9 = arith.constant 0 : index
    %c0_10 = arith.constant 0 : index
    %10 = vector.load %arg3[%c0_8, %c0_9, %c0_10] : memref<1x8x2xf32, #tpu.memory_space<vmem>>, vector<1x8x2xf32>
    %11 = vector.shape_cast %10 : vector<1x8x2xf32> to vector<8x2xf32>
    %c0_11 = arith.constant 0 : index
    %c0_12 = arith.constant 0 : index
    %c0_13 = arith.constant 0 : index
    %12 = vector.load %arg4[%c0_11, %c0_12, %c0_13] : memref<1x8x8xf32, #tpu.memory_space<vmem>>, vector<1x8x8xf32>
    %13 = vector.shape_cast %12 : vector<1x8x8xf32> to vector<8x8xf32>
    %14 = vector.extract_strided_slice %7 {offsets = [0, 0], sizes = [1, 225], strides = [1, 1]} : vector<2x225xf32> to vector<1x225xf32>
    %15 = vector.extract_strided_slice %11 {offsets = [0, 0], sizes = [8, 1], strides = [1, 1]} : vector<8x2xf32> to vector<8x1xf32>
    %16 = vector.broadcast %14 : vector<1x225xf32> to vector<8x225xf32>
    %17 = vector.broadcast %15 : vector<8x1xf32> to vector<8x225xf32>
    %18 = arith.subf %16, %17 : vector<8x225xf32>
    %19 = arith.mulf %18, %18 : vector<8x225xf32>
    %20 = vector.extract_strided_slice %7 {offsets = [1, 0], sizes = [1, 225], strides = [1, 1]} : vector<2x225xf32> to vector<1x225xf32>
    %21 = vector.extract_strided_slice %11 {offsets = [0, 1], sizes = [8, 1], strides = [1, 1]} : vector<8x2xf32> to vector<8x1xf32>
    %22 = vector.broadcast %20 : vector<1x225xf32> to vector<8x225xf32>
    %23 = vector.broadcast %21 : vector<8x1xf32> to vector<8x225xf32>
    %24 = arith.subf %22, %23 : vector<8x225xf32>
    %25 = arith.mulf %24, %24 : vector<8x225xf32>
    %26 = arith.addf %19, %25 : vector<8x225xf32>
    %cst_14 = arith.constant -2.500000e-01 : f32
    %27 = vector.broadcast %cst_14 : f32 to vector<8x225xf32>
    %28 = arith.mulf %26, %27 : vector<8x225xf32>
    %29 = math.exp %28 : vector<8x225xf32>
    %cst_15 = arith.constant dense<0.000000e+00> : vector<8x225xf32>
    %30 = tpu.matmul %13, %29, %cst_15 {dimension_numbers = #tpu.dot_dimension_numbers<[1], [0], [0], [1], [0, 0, 1, 1], [], []>} : vector<8x8xf32>, vector<8x225xf32>, vector<8x225xf32> -> vector<8x225xf32>
    %31 = vector.broadcast %9 : vector<1x225xf32> to vector<8x225xf32>
    %32 = arith.mulf %29, %31 : vector<8x225xf32>
    %33 = tpu.concatenate %29, %32 in 0 : vector<8x225xf32>, vector<8x225xf32> -> vector<16x225xf32>
    %34 = math.absf %33 : vector<16x225xf32>
    %cst_16 = arith.constant 1.000000e+30 : f32
    %35 = vector.broadcast %cst_16 : f32 to vector<16x225xf32>
    %36 = arith.cmpf olt, %34, %35 : vector<16x225xf32>
    %cst_17 = arith.constant 0.000000e+00 : f32
    %37 = vector.broadcast %cst_17 : f32 to vector<16x225xf32>
    %38 = arith.select %36, %33, %37 : vector<16x225xi1>, vector<16x225xf32>
    %cst_18 = arith.constant dense<0.000000e+00> : vector<16x225xf32>
    %39 = tpu.matmul %38, %5, %cst_18 {dimension_numbers = #tpu.dot_dimension_numbers<[1], [0], [0], [1], [0, 0, 1, 1], [], []>} : vector<16x225xf32>, vector<225x225xf32>, vector<16x225xf32> -> vector<16x225xf32>
    %40 = vector.extract_strided_slice %39 {offsets = [0, 0], sizes = [8, 225], strides = [1, 1]} : vector<16x225xf32> to vector<8x225xf32>
    %41 = vector.extract_strided_slice %39 {offsets = [8, 0], sizes = [8, 225], strides = [1, 1]} : vector<16x225xf32> to vector<8x225xf32>
    %42 = arith.mulf %30, %40 : vector<8x225xf32>
    %cst_19 = arith.constant dense<0.000000e+00> : vector<225xf32>
    %43 = vector.multi_reduction <add>, %42, %cst_19 [0] : vector<8x225xf32> to vector<225xf32>
    %44 = vector.shape_cast %43 : vector<225xf32> to vector<1x225xf32>
    %45 = arith.mulf %30, %41 : vector<8x225xf32>
    %cst_20 = arith.constant dense<0.000000e+00> : vector<225xf32>
    %46 = vector.multi_reduction <add>, %45, %cst_20 [0] : vector<8x225xf32> to vector<225xf32>
    %47 = vector.shape_cast %46 : vector<225xf32> to vector<1x225xf32>
    %48 = tpu.reciprocal %44 {approx = true} : vector<1x225xf32> -> vector<1x225xf32>
    %49 = arith.mulf %44, %48 : vector<1x225xf32>
    %cst_21 = arith.constant 2.000000e+00 : f32
    %50 = vector.broadcast %cst_21 : f32 to vector<1x225xf32>
    %51 = arith.subf %50, %49 : vector<1x225xf32>
    %52 = arith.mulf %48, %51 : vector<1x225xf32>
    %53 = arith.mulf %47, %52 : vector<1x225xf32>
    %54 = vector.shape_cast %53 : vector<1x225xf32> to vector<1x1x225xf32>
    %c0_22 = arith.constant 0 : index
    %c0_23 = arith.constant 0 : index
    %c0_24 = arith.constant 0 : index
    %55 = vector.load %arg6[%c0_22, %c0_23, %c0_24] : memref<1x1x225xf32, #tpu.memory_space<vmem>>, vector<1x1x225xf32>
    tpu.vector_store %arg6[%c0_22, %c0_23, %c0_24], %54 {strides = array<i32>} : memref<1x1x225xf32, #tpu.memory_space<vmem>>, vector<1x1x225xf32>,
    return
  }
  func.func @transform_0(%arg0: i32) -> (i32, i32, i32) {
    %c0_i32 = arith.constant 0 : i32
    %c0_i32_0 = arith.constant 0 : i32
    %c0_i32_1 = arith.constant 0 : i32
    return %arg0, %c0_i32, %c0_i32_0 : i32, i32, i32
  }
  func.func @transform_1(%arg0: i32) -> (i32, i32, i32) {
    %c0_i32 = arith.constant 0 : i32
    %c0_i32_0 = arith.constant 0 : i32
    %c0_i32_1 = arith.constant 0 : i32
    return %arg0, %c0_i32, %c0_i32_0 : i32, i32, i32
  }
  func.func @transform_2(%arg0: i32) -> (i32, i32, i32) {
    %c0_i32 = arith.constant 0 : i32
    %c0_i32_0 = arith.constant 0 : i32
    %c0_i32_1 = arith.constant 0 : i32
    return %arg0, %c0_i32, %c0_i32_0 : i32, i32, i32
  }
  func.func @transform_3(%arg0: i32) -> (i32, i32, i32) {
    %c0_i32 = arith.constant 0 : i32
    %c0_i32_0 = arith.constant 0 : i32
    %c0_i32_1 = arith.constant 0 : i32
    return %arg0, %c0_i32, %c0_i32_0 : i32, i32, i32
  }
  func.func @transform_4(%arg0: i32) -> (i32, i32) {
    %c0_i32 = arith.constant 0 : i32
    %c0_i32_0 = arith.constant 0 : i32
    %c0_i32_1 = arith.constant 0 : i32
    return %c0_i32, %c0_i32_0 : i32, i32
  }
  func.func @transform_5(%arg0: i32) -> (i32, i32, i32) {
    %c0_i32 = arith.constant 0 : i32
    %c0_i32_0 = arith.constant 0 : i32
    %c0_i32_1 = arith.constant 0 : i32
    return %arg0, %c0_i32, %c0_i32_0 : i32, i32, i32
  }
}

</mosaic_0001>

<llo_original>
// kernel: tpu_custom_call.1
$region0: #{tpu_custom_call.1}
  #allocation0 [shape = 'u32[]', space=smem, size = 0x4, offset = 0x4, fixed_abs, tag = 'smem constant byte address 0x4 - core index']
  #allocation1 [shape = 'u32[144,128]{1,0:T(1,128)}', space=vmem, size = 0x12000, scoped, tag = 'internal scratch']
  %s0 = inlined_call_operand.vmem [shape: f32[2,2,225], index: 0, kind: input, shape index: {}]
  %s1 = inlined_call_operand.vmem [shape: f32[2,1,225], index: 1, kind: input, shape index: {}]
  %s2 = inlined_call_operand.vmem [shape: f32[2,8,2], index: 2, kind: input, shape index: {}]
  %s3 = inlined_call_operand.vmem [shape: f32[2,8,8], index: 3, kind: input, shape index: {}]
  %s4 = inlined_call_operand.hbm [shape: f32[225,225], index: 4, kind: input, shape index: {}]
  %s5 = inlined_call_operand.hbm [shape: f32[2,1,225], index: 5, kind: output, shape index: {}]
  %s6 = sld [smem:[#allocation0]]
  $region57: #{tpu_custom_call.1} parent=0
    _
  %s8 = ssub.s32 1, %s6
  %s9 = scalar_select 0, %s8, %s6
  $region1: #{tpu_custom_call.1} parent=0
    #allocation2 [shape = 'u8[237568]{0}', space=vmem, size = 0x3a000, scoped, tag = 'input window, operand 4, single buffered']
    #allocation3 [shape = 's32[2]{0}', space=sflag, size = 0x8, scoped, tag = 'scoped memory for tpu_custom_call.1']
    #allocation4 [shape = 's32[2]{0}', space=sflag, size = 0x8, scoped, tag = 'scoped memory for tpu_custom_call.1']
    #allocation5 [shape = 'u8[2048]{0}', space=vmem, size = 0x800, scoped, tag = 'output window, operand 0']
    %10 = vsyncpa [#allocation3], 0
    %11 = vsyncpa [#allocation4], 0
    %s12 = scalar_lea.sflag [#allocation4], 1
    %13 = vsyncpa %s12, 0
    loop: start=0, step=1, limit=4
    $region2: #{tpu_custom_call.1} parent=1 // loop_pre_header
      _
    $region3: #{tpu_custom_call.1} parent=1 // loop_header
      %s15 = sphi 0, %s19
      %p16 = scmp.ge.s32.totalorder %s15, 4
      %s25 = sphi 0, %s27
      %s28 = sphi 0, %s25
      %s29 = sphi 0, %s28
      %s45 = sphi 0, %s29
      %s51 = sphi 0, %s53
      %s54 = sphi 0, %s51
      %s55 = sphi 0, %s54
      %s71 = sphi 0, %s55
      %s77 = sphi 0, %s79
      %s80 = sphi 0, %s77
      %s81 = sphi 0, %s80
      %s97 = sphi 0, %s81
      %s103 = sphi 0, %s105
      %s106 = sphi 0, %s103
      %s107 = sphi 0, %s106
      %s123 = sphi 0, %s107
      %s127 = sphi 0, %s127
      %s129 = sphi 0, %s127
      %s130 = sphi 0, %s129
      %s144 = sphi 0, %s130
      %s150 = sphi 0, %s152
      %s153 = sphi 0, %s150
      %s154 = sphi 0, %s153
      %s170 = sphi 0, %s154
    $region4: #{tpu_custom_call.1} parent=1 // loop_header_branch
      %18 = sbr.rel (%p16) target = $region8
    $region5: #{tpu_custom_call.1} parent=1 // loop_body
      %s20 = ssub.s32 %s15, 1
      %s21 = ssub.s32 %s15, 2
      %s22 = sadd.s32 %s15, 1
      %s23 = ssub.s32 %s15, %s22
      %p24 = scmp.eq.s32.totalorder %s23, 0
      %s26 = sadd.s32 %s25, 1
      %s27 = scalar_select %p24, %s25, %s26
      %p30 = pneg %p24
      %p31 = scmp.eq.s32.totalorder %s15, 1
      %p32 = por %p30, %p31
      %p33 = scmp.ne.s32.totalorder %s25, %s28
      %p34 = scmp.eq.s32.totalorder %s15, 0
      %p35 = por %p33, %p34
      %p36 = scmp.ne.s32.totalorder %s25, %s28
      %p37 = scmp.eq.s32.totalorder %s20, 1
      %p38 = por %p36, %p37
      %p39 = scmp.ne.s32.totalorder %s28, %s29
      %p40 = scmp.eq.s32.totalorder %s20, 0
      %p41 = por %p39, %p40
      %p42 = scmp.ne.s32.totalorder %s28, %s29
      %p43 = scmp.eq.s32.totalorder %s21, 1
      %p44 = por %p42, %p43
      %p46 = scmp.ne.s32.totalorder %s29, %s45
      %p47 = scmp.eq.s32.totalorder %s21, 0
      %p48 = por %p46, %p47
      %s49 = ssub.s32 %s15, %s22
      %p50 = scmp.eq.s32.totalorder %s49, 0
      %s52 = sadd.s32 %s51, 1
      %s53 = scalar_select %p50, %s51, %s52
      %p56 = pneg %p50
      %p57 = scmp.eq.s32.totalorder %s15, 1
      %p58 = por %p56, %p57
      %p59 = scmp.ne.s32.totalorder %s51, %s54
      %p60 = scmp.eq.s32.totalorder %s15, 0
      %p61 = por %p59, %p60
      %p62 = scmp.ne.s32.totalorder %s51, %s54
      %p63 = scmp.eq.s32.totalorder %s20, 1
      %p64 = por %p62, %p63
      %p65 = scmp.ne.s32.totalorder %s54, %s55
      %p66 = scmp.eq.s32.totalorder %s20, 0
      %p67 = por %p65, %p66
      %p68 = scmp.ne.s32.totalorder %s54, %s55
      %p69 = scmp.eq.s32.totalorder %s21, 1
      %p70 = por %p68, %p69
      %p72 = scmp.ne.s32.totalorder %s55, %s71
      %p73 = scmp.eq.s32.totalorder %s21, 0
      %p74 = por %p72, %p73
      %s75 = ssub.s32 %s15, %s22
      %p76 = scmp.eq.s32.totalorder %s75, 0
      %s78 = sadd.s32 %s77, 1
      %s79 = scalar_select %p76, %s77, %s78
      %p82 = pneg %p76
      %p83 = scmp.eq.s32.totalorder %s15, 1
      %p84 = por %p82, %p83
      %p85 = scmp.ne.s32.totalorder %s77, %s80
      %p86 = scmp.eq.s32.totalorder %s15, 0
      %p87 = por %p85, %p86
      %p88 = scmp.ne.s32.totalorder %s77, %s80
      %p89 = scmp.eq.s32.totalorder %s20, 1
      %p90 = por %p88, %p89
      %p91 = scmp.ne.s32.totalorder %s80, %s81
      %p92 = scmp.eq.s32.totalorder %s20, 0
      %p93 = por %p91, %p92
      %p94 = scmp.ne.s32.totalorder %s80, %s81
      %p95 = scmp.eq.s32.totalorder %s21, 1
      %p96 = por %p94, %p95
      %p98 = scmp.ne.s32.totalorder %s81, %s97
      %p99 = scmp.eq.s32.totalorder %s21, 0
      %p100 = por %p98, %p99
      %s101 = ssub.s32 %s15, %s22
      %p102 = scmp.eq.s32.totalorder %s101, 0
      %s104 = sadd.s32 %s103, 1
      %s105 = scalar_select %p102, %s103, %s104
      %p108 = pneg %p102
      %p109 = scmp.eq.s32.totalorder %s15, 1
      %p110 = por %p108, %p109
      %p111 = scmp.ne.s32.totalorder %s103, %s106
      %p112 = scmp.eq.s32.totalorder %s15, 0
      %p113 = por %p111, %p112
      %p114 = scmp.ne.s32.totalorder %s103, %s106
      %p115 = scmp.eq.s32.totalorder %s20, 1
      %p116 = por %p114, %p115
      %p117 = scmp.ne.s32.totalorder %s106, %s107
      %p118 = scmp.eq.s32.totalorder %s20, 0
      %p119 = por %p117, %p118
      %p120 = scmp.ne.s32.totalorder %s106, %s107
      %p121 = scmp.eq.s32.totalorder %s21, 1
      %p122 = por %p120, %p121
      %p124 = scmp.ne.s32.totalorder %s107, %s123
      %p125 = scmp.eq.s32.totalorder %s21, 0
      %p126 = por %p124, %p125
      %s128 = sadd.s32 %s127, 1
      %p131 = scmp.eq.s32.totalorder %s15, 1
      %p132 = scmp.ne.s32.totalorder %s127, %s129
      %p133 = scmp.eq.s32.totalorder %s15, 0
      %p134 = por %p132, %p133
      %p135 = scmp.ne.s32.totalorder %s127, %s129
      %p136 = scmp.eq.s32.totalorder %s20, 1
      %p137 = por %p135, %p136
      %p138 = scmp.ne.s32.totalorder %s129, %s130
      %p139 = scmp.eq.s32.totalorder %s20, 0
      %p140 = por %p138, %p139
      %p141 = scmp.ne.s32.totalorder %s129, %s130
      %p142 = scmp.eq.s32.totalorder %s21, 1
      %p143 = por %p141, %p142
      %p145 = scmp.ne.s32.totalorder %s130, %s144
      %p146 = scmp.eq.s32.totalorder %s21, 0
      %p147 = por %p145, %p146
      %s148 = ssub.s32 %s15, %s22
      %p149 = scmp.eq.s32.totalorder %s148, 0
      %s151 = sadd.s32 %s150, 1
      %s152 = scalar_select %p149, %s150, %s151
      %p155 = pneg %p149
      %p156 = scmp.eq.s32.totalorder %s15, 1
      %p157 = por %p155, %p156
      %p158 = scmp.ne.s32.totalorder %s150, %s153
      %p159 = scmp.eq.s32.totalorder %s15, 0
      %p160 = por %p158, %p159
      %p161 = scmp.ne.s32.totalorder %s150, %s153
      %p162 = scmp.eq.s32.totalorder %s20, 1
      %p163 = por %p161, %p162
      %p164 = scmp.ne.s32.totalorder %s153, %s154
      %p165 = scmp.eq.s32.totalorder %s20, 0
      %p166 = por %p164, %p165
      %p167 = scmp.ne.s32.totalorder %s153, %s154
      %p168 = scmp.eq.s32.totalorder %s21, 1
      %p169 = por %p167, %p168
      %p171 = scmp.ne.s32.totalorder %s154, %s170
      %p172 = scmp.eq.s32.totalorder %s21, 0
      %p173 = por %p171, %p172
      %p174 = scmp.le.s32.totalorder 1, %s15
      %p175 = scmp.lt.s32.totalorder %s15, 3
      %p176 = pnand %p174, %p175
      %p177 = pneg %p176
      // Predicated region
      $region9: #{tpu_custom_call.1} parent=5 // pred_check
        _
      $region10: #{tpu_custom_call.1} parent=5 // pred_check_branch
        %179 = sbr.rel (%p176) target = $region12
      $region11: #{tpu_custom_call.1} parent=5 // pred_region
        %s180 = ssub.s32 %s15, 1
        // Predicated region
        $region13: #{tpu_custom_call.1} parent=11 // pred_check
          %p181 = pneg %p140
        $region14: #{tpu_custom_call.1} parent=11 // pred_check_branch
          %183 = sbr.rel (%p181) target = $region16
        $region15: #{tpu_custom_call.1} parent=11 // pred_region
          %s185 = ssub.s32 7424, 7424
          %186 = vsyncadd [#allocation3], %s185
          %s187 = sshll.u32 [#allocation2], 4
          %s188 = int_to_ptr.vmem [resolvable:$true] %s187
          %193 = dma.hbm_to_vmem [thread:$0]  %s4, 7424, %s188, [#allocation3], 256, 256, 16
        $region16: #{tpu_custom_call.1} parent=11 // pred_fallthru
          _
      $region12: #{tpu_custom_call.1} parent=5 // pred_fallthru
        _
      %p194 = scmp.lt.s32.totalorder %s15, 2
      // Predicated region
      $region17: #{tpu_custom_call.1} parent=5 // pred_check
        %p195 = pneg %p194
      $region18: #{tpu_custom_call.1} parent=5 // pred_check_branch
        %197 = sbr.rel (%p195) target = $region20
      $region19: #{tpu_custom_call.1} parent=5 // pred_region
        // Predicated region
        $region21: #{tpu_custom_call.1} parent=19 // pred_check
          %p198 = pneg %p35
        $region22: #{tpu_custom_call.1} parent=19 // pred_check_branch
          %200 = sbr.rel (%p198) target = $region24
        $region23: #{tpu_custom_call.1} parent=19 // pred_region
          %p201 = scmp.lt.s32.totalorder %s15, 1
          %s202 = scalar_select %p201, %s15, 1
          %s203 = smul.addr %s202, 2
          %s204 = smul.addr %s203, 2
          %s205 = scalar_lea.vmem %s0, %s204
        $region24: #{tpu_custom_call.1} parent=19 // pred_fallthru
          _
        // Predicated region
        $region25: #{tpu_custom_call.1} parent=19 // pred_check
          %p206 = pneg %p61
        $region26: #{tpu_custom_call.1} parent=19 // pred_check_branch
          %208 = sbr.rel (%p206) target = $region28
        $region27: #{tpu_custom_call.1} parent=19 // pred_region
          %p209 = scmp.lt.s32.totalorder %s15, 1
          %s210 = scalar_select %p209, %s15, 1
          %s211 = smul.addr %s210, 2
          %s212 = scalar_lea.vmem %s1, %s211
        $region28: #{tpu_custom_call.1} parent=19 // pred_fallthru
          _
        // Predicated region
        $region29: #{tpu_custom_call.1} parent=19 // pred_check
          %p213 = pneg %p87
        $region30: #{tpu_custom_call.1} parent=19 // pred_check_branch
          %215 = sbr.rel (%p213) target = $region32
        $region31: #{tpu_custom_call.1} parent=19 // pred_region
          %p216 = scmp.lt.s32.totalorder %s15, 1
          %s217 = scalar_select %p216, %s15, 1
          %s218 = smul.addr %s217, 8
          %s219 = scalar_lea.vmem %s2, %s218
        $region32: #{tpu_custom_call.1} parent=19 // pred_fallthru
          _
        // Predicated region
        $region33: #{tpu_custom_call.1} parent=19 // pred_check
          %p220 = pneg %p113
        $region34: #{tpu_custom_call.1} parent=19 // pred_check_branch
          %222 = sbr.rel (%p220) target = $region36
        $region35: #{tpu_custom_call.1} parent=19 // pred_region
          %p223 = scmp.lt.s32.totalorder %s15, 1
          %s224 = scalar_select %p223, %s15, 1
          %s225 = smul.addr %s224, 8
          %s226 = scalar_lea.vmem %s3, %s225
        $region36: #{tpu_custom_call.1} parent=19 // pred_fallthru
          _
      $region20: #{tpu_custom_call.1} parent=5 // pred_fallthru
        _
      %p227 = scmp.le.s32.totalorder 1, %s15
      %p228 = scmp.lt.s32.totalorder %s15, 3
      %p229 = pnand %p227, %p228
      %p230 = pneg %p229
      // Predicated region
      $region37: #{tpu_custom_call.1} parent=5 // pred_check
        _
      $region38: #{tpu_custom_call.1} parent=5 // pred_check_branch
        %232 = sbr.rel (%p229) target = $region40
      $region39: #{tpu_custom_call.1} parent=5 // pred_region
        %s233 = ssub.s32 %s15, 1
        // Predicated region
        $region41: #{tpu_custom_call.1} parent=39 // pred_check
          %p234 = pneg %p140
        $region42: #{tpu_custom_call.1} parent=39 // pred_check_branch
          %236 = sbr.rel (%p234) target = $region44
        $region43: #{tpu_custom_call.1} parent=39 // pred_region
          %237 = dma.done [#allocation3], 7424
        $region44: #{tpu_custom_call.1} parent=39 // pred_fallthru
          _
        %p238 = scmp.lt.s32.totalorder %s20, 1
        %s239 = scalar_select %p238, %s20, 1
        %s240 = smul.addr %s239, 2
        %s241 = smul.addr %s240, 2
        %s242 = scalar_lea.vmem %s0, %s241
        %p243 = pneg %p41
        %p244 = pneg %p38
        %p245 = scmp.lt.s32.totalorder %s20, 1
        %s246 = scalar_select %p245, %s20, 1
        %s247 = smul.addr %s246, 2
        %s248 = scalar_lea.vmem %s1, %s247
        %p249 = pneg %p67
        %p250 = pneg %p64
        %p251 = scmp.lt.s32.totalorder %s20, 1
        %s252 = scalar_select %p251, %s20, 1
        %s253 = smul.addr %s252, 8
        %s254 = scalar_lea.vmem %s2, %s253
        %p255 = pneg %p93
        %p256 = pneg %p90
        %p257 = scmp.lt.s32.totalorder %s20, 1
        %s258 = scalar_select %p257, %s20, 1
        %s259 = smul.addr %s258, 8
        %s260 = scalar_lea.vmem %s3, %s259
        %p261 = pneg %p119
        %p262 = pneg %p116
        %p263 = pneg %p140
        %p264 = pneg %p137
        %p265 = pneg %p166
        %p266 = pneg %p163
        %s267 = sand.u32 %s153, 1
        %s268 = scalar_lea.sflag [#allocation4], %s267
        %s269 = sand.u32 %s153, 1
        %s270 = smul.addr %s269, 2
        %s271 = scalar_lea.vmem [#allocation5], %s270
        %p272 = scmp.lt.s32.totalorder %s20, 1
        %s273 = scalar_select %p272, %s20, 1
        %s274 = smul.addr %s273, 2
        %s275 = smul.addr %s274, 2
        %s276 = scalar_lea.vmem %s0, %s275
        %p277 = scmp.lt.s32.totalorder %s20, 1
        %s278 = scalar_select %p277, %s20, 1
        %s279 = smul.addr %s278, 2
        %s280 = scalar_lea.vmem %s1, %s279
        %p281 = scmp.lt.s32.totalorder %s20, 1
        %s282 = scalar_select %p281, %s20, 1
        %s283 = smul.addr %s282, 8
        %s284 = scalar_lea.vmem %s2, %s283
        %p285 = scmp.lt.s32.totalorder %s20, 1
        %s286 = scalar_select %p285, %s20, 1
        %s287 = smul.addr %s286, 8
        %s288 = scalar_lea.vmem %s3, %s287
        %v289 = vld [vmem:[#allocation2] sm:$0xff]
        %v290 = vld [vmem:[#allocation2 + $0x8] sm:$0xff]
        %v291 = vld [vmem:[#allocation2 + $0x10] sm:$0xff]
        %v292 = vld [vmem:[#allocation2 + $0x18] sm:$0xff]
        %v293 = vld [vmem:[#allocation2 + $0x20] sm:$0xff]
        %v294 = vld [vmem:[#allocation2 + $0x28] sm:$0xff]
        %v295 = vld [vmem:[#allocation2 + $0x30] sm:$0xff]
        %v296 = vld [vmem:[#allocation2 + $0x38] sm:$0xff]
        %v297 = vld [vmem:[#allocation2 + $0x40] sm:$0xff]
        %v298 = vld [vmem:[#allocation2 + $0x48] sm:$0xff]
        %v299 = vld [vmem:[#allocation2 + $0x50] sm:$0xff]
        %v300 = vld [vmem:[#allocation2 + $0x58] sm:$0xff]
        %v301 = vld [vmem:[#allocation2 + $0x60] sm:$0xff]
        %v302 = vld [vmem:[#allocation2 + $0x68] sm:$0xff]
        %v303 = vld [vmem:[#allocation2 + $0x70] sm:$0xff]
        %v304 = vld [vmem:[#allocation2 + $0x78] sm:$0xff]
        %v305 = vld [vmem:[#allocation2 + $0x80] sm:$0xff]
        %v306 = vld [vmem:[#allocation2 + $0x88] sm:$0xff]
        %v307 = vld [vmem:[#allocation2 + $0x90] sm:$0xff]
        %v308 = vld [vmem:[#allocation2 + $0x98] sm:$0xff]
        %v309 = vld [vmem:[#allocation2 + $0xa0] sm:$0xff]
        %v310 = vld [vmem:[#allocation2 + $0xa8] sm:$0xff]
        %v311 = vld [vmem:[#allocation2 + $0xb0] sm:$0xff]
        %v312 = vld [vmem:[#allocation2 + $0xb8] sm:$0xff]
        %v313 = vld [vmem:[#allocation2 + $0xc0] sm:$0xff]
        %v314 = vld [vmem:[#allocation2 + $0xc8] sm:$0xff]
        %v315 = vld [vmem:[#allocation2 + $0xd0] sm:$0xff]
        %v316 = vld [vmem:[#allocation2 + $0xd8] sm:$0xff]
        %v317 = vld [vmem:[#allocation2 + $0xe0] sm:$0xff]
        %v318 = vld [vmem:[#allocation2 + $0xe8] sm:$0xff]
        %v319 = vld [vmem:[#allocation2 + $0xf0] sm:$0xff]
        %v320 = vld [vmem:[#allocation2 + $0xf8] sm:$0xff]
        %v321 = vld [vmem:[#allocation2 + $0x100] sm:$0xff]
        %v322 = vld [vmem:[#allocation2 + $0x108] sm:$0xff]
        %v323 = vld [vmem:[#allocation2 + $0x110] sm:$0xff]
        %v324 = vld [vmem:[#allocation2 + $0x118] sm:$0xff]
        %v325 = vld [vmem:[#allocation2 + $0x120] sm:$0xff]
        %v326 = vld [vmem:[#allocation2 + $0x128] sm:$0xff]
        %v327 = vld [vmem:[#allocation2 + $0x130] sm:$0xff]
        %v328 = vld [vmem:[#allocation2 + $0x138] sm:$0xff]
        %v329 = vld [vmem:[#allocation2 + $0x140] sm:$0xff]
        %v330 = vld [vmem:[#allocation2 + $0x148] sm:$0xff]
        %v331 = vld [vmem:[#allocation2 + $0x150] sm:$0xff]
        %v332 = vld [vmem:[#allocation2 + $0x158] sm:$0xff]
        %v333 = vld [vmem:[#allocation2 + $0x160] sm:$0xff]
        %v334 = vld [vmem:[#allocation2 + $0x168] sm:$0xff]
        %v335 = vld [vmem:[#allocation2 + $0x170] sm:$0xff]
        %v336 = vld [vmem:[#allocation2 + $0x178] sm:$0xff]
        %v337 = vld [vmem:[#allocation2 + $0x180] sm:$0xff]
        %v338 = vld [vmem:[#allocation2 + $0x188] sm:$0xff]
        %v339 = vld [vmem:[#allocation2 + $0x190] sm:$0xff]
        %v340 = vld [vmem:[#allocation2 + $0x198] sm:$0xff]
        %v341 = vld [vmem:[#allocation2 + $0x1a0] sm:$0xff]
        %v342 = vld [vmem:[#allocation2 + $0x1a8] sm:$0xff]
        %v343 = vld [vmem:[#allocation2 + $0x1b0] sm:$0xff]
        %v344 = vld [vmem:[#allocation2 + $0x1b8] sm:$0xff]
        %v345 = vld [vmem:[#allocation2 + $0x1c0] sm:$0x1]
        %v346 = vld [vmem:[#allocation2 + $0x1c8] sm:$0x1]
        %v347 = vand.u32 2147483647, %v289
        %v348 = vand.u32 2147483647, %v290
        %v349 = vand.u32 2147483647, %v291
        %v350 = vand.u32 2147483647, %v292
        %v351 = vand.u32 2147483647, %v293
        %v352 = vand.u32 2147483647, %v294
        %v353 = vand.u32 2147483647, %v295
        %v354 = vand.u32 2147483647, %v296
        %v355 = vand.u32 2147483647, %v297
        %v356 = vand.u32 2147483647, %v298
        %v357 = vand.u32 2147483647, %v299
        %v358 = vand.u32 2147483647, %v300
        %v359 = vand.u32 2147483647, %v301
        %v360 = vand.u32 2147483647, %v302
        %v361 = vand.u32 2147483647, %v303
        %v362 = vand.u32 2147483647, %v304
        %v363 = vand.u32 2147483647, %v305
        %v364 = vand.u32 2147483647, %v306
        %v365 = vand.u32 2147483647, %v307
        %v366 = vand.u32 2147483647, %v308
        %v367 = vand.u32 2147483647, %v309
        %v368 = vand.u32 2147483647, %v310
        %v369 = vand.u32 2147483647, %v311
        %v370 = vand.u32 2147483647, %v312
        %v371 = vand.u32 2147483647, %v313
        %v372 = vand.u32 2147483647, %v314
        %v373 = vand.u32 2147483647, %v315
        %v374 = vand.u32 2147483647, %v316
        %v375 = vand.u32 2147483647, %v317
        %v376 = vand.u32 2147483647, %v318
        %v377 = vand.u32 2147483647, %v319
        %v378 = vand.u32 2147483647, %v320
        %v379 = vand.u32 2147483647, %v321
        %v380 = vand.u32 2147483647, %v322
        %v381 = vand.u32 2147483647, %v323
        %v382 = vand.u32 2147483647, %v324
        %v383 = vand.u32 2147483647, %v325
        %v384 = vand.u32 2147483647, %v326
        %v385 = vand.u32 2147483647, %v327
        %v386 = vand.u32 2147483647, %v328
        %v387 = vand.u32 2147483647, %v329
        %v388 = vand.u32 2147483647, %v330
        %v389 = vand.u32 2147483647, %v331
        %v390 = vand.u32 2147483647, %v332
        %v391 = vand.u32 2147483647, %v333
        %v392 = vand.u32 2147483647, %v334
        %v393 = vand.u32 2147483647, %v335
        %v394 = vand.u32 2147483647, %v336
        %v395 = vand.u32 2147483647, %v337
        %v396 = vand.u32 2147483647, %v338
        %v397 = vand.u32 2147483647, %v339
        %v398 = vand.u32 2147483647, %v340
        %v399 = vand.u32 2147483647, %v341
        %v400 = vand.u32 2147483647, %v342
        %v401 = vand.u32 2147483647, %v343
        %v402 = vand.u32 2147483647, %v344
        %v403 = vand.u32 2147483647, %v345
        %v404 = vand.u32 2147483647, %v346
        %vm405 = vcmp.lt.f32.partialorder %v347, 1e+30
        %vm406 = vcmp.lt.f32.partialorder %v348, 1e+30
        %vm407 = vcmp.lt.f32.partialorder %v349, 1e+30
        %vm408 = vcmp.lt.f32.partialorder %v350, 1e+30
        %vm409 = vcmp.lt.f32.partialorder %v351, 1e+30
        %vm410 = vcmp.lt.f32.partialorder %v352, 1e+30
        %vm411 = vcmp.lt.f32.partialorder %v353, 1e+30
        %vm412 = vcmp.lt.f32.partialorder %v354, 1e+30
        %vm413 = vcmp.lt.f32.partialorder %v355, 1e+30
        %vm414 = vcmp.lt.f32.partialorder %v356, 1e+30
        %vm415 = vcmp.lt.f32.partialorder %v357, 1e+30
        %vm416 = vcmp.lt.f32.partialorder %v358, 1e+30
        %vm417 = vcmp.lt.f32.partialorder %v359, 1e+30
        %vm418 = vcmp.lt.f32.partialorder %v360, 1e+30
        %vm419 = vcmp.lt.f32.partialorder %v361, 1e+30
        %vm420 = vcmp.lt.f32.partialorder %v362, 1e+30
        %vm421 = vcmp.lt.f32.partialorder %v363, 1e+30
        %vm422 = vcmp.lt.f32.partialorder %v364, 1e+30
        %vm423 = vcmp.lt.f32.partialorder %v365, 1e+30
        %vm424 = vcmp.lt.f32.partialorder %v366, 1e+30
        %vm425 = vcmp.lt.f32.partialorder %v367, 1e+30
        %vm426 = vcmp.lt.f32.partialorder %v368, 1e+30
        %vm427 = vcmp.lt.f32.partialorder %v369, 1e+30
        %vm428 = vcmp.lt.f32.partialorder %v370, 1e+30
        %vm429 = vcmp.lt.f32.partialorder %v371, 1e+30
        %vm430 = vcmp.lt.f32.partialorder %v372, 1e+30
        %vm431 = vcmp.lt.f32.partialorder %v373, 1e+30
        %vm432 = vcmp.lt.f32.partialorder %v374, 1e+30
        %vm433 = vcmp.lt.f32.partialorder %v375, 1e+30
        %vm434 = vcmp.lt.f32.partialorder %v376, 1e+30
        %vm435 = vcmp.lt.f32.partialorder %v377, 1e+30
        %vm436 = vcmp.lt.f32.partialorder %v378, 1e+30
        %vm437 = vcmp.lt.f32.partialorder %v379, 1e+30
        %vm438 = vcmp.lt.f32.partialorder %v380, 1e+30
        %vm439 = vcmp.lt.f32.partialorder %v381, 1e+30
        %vm440 = vcmp.lt.f32.partialorder %v382, 1e+30
        %vm441 = vcmp.lt.f32.partialorder %v383, 1e+30
        %vm442 = vcmp.lt.f32.partialorder %v384, 1e+30
        %vm443 = vcmp.lt.f32.partialorder %v385, 1e+30
        %vm444 = vcmp.lt.f32.partialorder %v386, 1e+30
        %vm445 = vcmp.lt.f32.partialorder %v387, 1e+30
        %vm446 = vcmp.lt.f32.partialorder %v388, 1e+30
        %vm447 = vcmp.lt.f32.partialorder %v389, 1e+30
        %vm448 = vcmp.lt.f32.partialorder %v390, 1e+30
        %vm449 = vcmp.lt.f32.partialorder %v391, 1e+30
        %vm450 = vcmp.lt.f32.partialorder %v392, 1e+30
        %vm451 = vcmp.lt.f32.partialorder %v393, 1e+30
        %vm452 = vcmp.lt.f32.partialorder %v394, 1e+30
        %vm453 = vcmp.lt.f32.partialorder %v395, 1e+30
        %vm454 = vcmp.lt.f32.partialorder %v396, 1e+30
        %vm455 = vcmp.lt.f32.partialorder %v397, 1e+30
        %vm456 = vcmp.lt.f32.partialorder %v398, 1e+30
        %vm457 = vcmp.lt.f32.partialorder %v399, 1e+30
        %vm458 = vcmp.lt.f32.partialorder %v400, 1e+30
        %vm459 = vcmp.lt.f32.partialorder %v401, 1e+30
        %vm460 = vcmp.lt.f32.partialorder %v402, 1e+30
        %vm461 = vcmp.lt.f32.partialorder %v403, 1e+30
        %vm462 = vcmp.lt.f32.partialorder %v404, 1e+30
        %v463 = vsel %vm405, %v289, 0.0
        %v464 = vsel %vm406, %v290, 0.0
        %v465 = vsel %vm407, %v291, 0.0
        %v466 = vsel %vm408, %v292, 0.0
        %v467 = vsel %vm409, %v293, 0.0
        %v468 = vsel %vm410, %v294, 0.0
        %v469 = vsel %vm411, %v295, 0.0
        %v470 = vsel %vm412, %v296, 0.0
        %v471 = vsel %vm413, %v297, 0.0
        %v472 = vsel %vm414, %v298, 0.0
        %v473 = vsel %vm415, %v299, 0.0
        %v474 = vsel %vm416, %v300, 0.0
        %v475 = vsel %vm417, %v301, 0.0
        %v476 = vsel %vm418, %v302, 0.0
        %v477 = vsel %vm419, %v303, 0.0
        %v478 = vsel %vm420, %v304, 0.0
        %v479 = vsel %vm421, %v305, 0.0
        %v480 = vsel %vm422, %v306, 0.0
        %v481 = vsel %vm423, %v307, 0.0
        %v482 = vsel %vm424, %v308, 0.0
        %v483 = vsel %vm425, %v309, 0.0
        %v484 = vsel %vm426, %v310, 0.0
        %v485 = vsel %vm427, %v311, 0.0
        %v486 = vsel %vm428, %v312, 0.0
        %v487 = vsel %vm429, %v313, 0.0
        %v488 = vsel %vm430, %v314, 0.0
        %v489 = vsel %vm431, %v315, 0.0
        %v490 = vsel %vm432, %v316, 0.0
        %v491 = vsel %vm433, %v317, 0.0
        %v492 = vsel %vm434, %v318, 0.0
        %v493 = vsel %vm435, %v319, 0.0
        %v494 = vsel %vm436, %v320, 0.0
        %v495 = vsel %vm437, %v321, 0.0
        %v496 = vsel %vm438, %v322, 0.0
        %v497 = vsel %vm439, %v323, 0.0
        %v498 = vsel %vm440, %v324, 0.0
        %v499 = vsel %vm441, %v325, 0.0
        %v500 = vsel %vm442, %v326, 0.0
        %v501 = vsel %vm443, %v327, 0.0
        %v502 = vsel %vm444, %v328, 0.0
        %v503 = vsel %vm445, %v329, 0.0
        %v504 = vsel %vm446, %v330, 0.0
        %v505 = vsel %vm447, %v331, 0.0
        %v506 = vsel %vm448, %v332, 0.0
        %v507 = vsel %vm449, %v333, 0.0
        %v508 = vsel %vm450, %v334, 0.0
        %v509 = vsel %vm451, %v335, 0.0
        %v510 = vsel %vm452, %v336, 0.0
        %v511 = vsel %vm453, %v337, 0.0
        %v512 = vsel %vm454, %v338, 0.0
        %v513 = vsel %vm455, %v339, 0.0
        %v514 = vsel %vm456, %v340, 0.0
        %v515 = vsel %vm457, %v341, 0.0
        %v516 = vsel %vm458, %v342, 0.0
        %v517 = vsel %vm459, %v343, 0.0
        %v518 = vsel %vm460, %v344, 0.0
        %v519 = vsel %vm461, %v345, 0.0
        %v520 = vsel %vm462, %v346, 0.0
        %v521 = vld [vmem:[%s276] sm:$0xf]
        %v522 = vld [vmem:[%s280] sm:$0x3]
        %v523 = vld [vmem:[%s284] sm:$0xff]
        %v524 = vld [vmem:[%s288] sm:$0xff]
        %v526 = vlaneseq
        %v527 = vshrl.u32 %v526, 7
        %v528 = vsub.s32 0, %v527
        %v529 = vrot.slane %v521, %v528
        %v530 = vlaneseq
        %v531 = vshrl.u32 %v530, 7
        %v532 = vsub.s32 2, %v531
        %v533 = vrot.slane %v521, %v532
        %v536 = vlaneseq
        %v537 = vshrl.u32 %v536, 7
        %v538 = vsub.s32 0, %v537
        %v539 = vrot.slane %v529, %v538
        %v540 = vlaneseq
        %v541 = vshrl.u32 %v540, 7
        %v542 = vsub.s32 0, %v541
        %v543 = vrot.slane %v533, %v542
        %545 = vset.pattern.permute.xlu0 0
        %546 = vperm.xlu0 %545, %v523
        %v547 = vpop.permute.xlu0 %546
        %v549 = vsub.f32 %v539, %v547
        %v550 = vsub.f32 %v543, %v547
        %v551 = vmul.f32 %v549, %v549
        %v552 = vmul.f32 %v550, %v550
        %v553 = vlaneseq
        %v554 = vshrl.u32 %v553, 7
        %v555 = vsub.s32 1, %v554
        %v556 = vrot.slane %v521, %v555
        %v557 = vlaneseq
        %v558 = vshrl.u32 %v557, 7
        %v559 = vsub.s32 3, %v558
        %v560 = vrot.slane %v521, %v559
        %v563 = vlaneseq
        %v564 = vshrl.u32 %v563, 7
        %v565 = vsub.s32 1, %v564
        %v566 = vrot.slane %v556, %v565
        %v567 = vlaneseq
        %v568 = vshrl.u32 %v567, 7
        %v569 = vsub.s32 1, %v568
        %v570 = vrot.slane %v560, %v569
        %571 = vset.pattern.permute.xlu0 1
        %572 = vperm.xlu0 %571, %v523
        %v573 = vpop.permute.xlu0 %572
        %v575 = vsub.f32 %v566, %v573
        %v576 = vsub.f32 %v570, %v573
        %v577 = vmul.f32 %v575, %v575
        %v578 = vmul.f32 %v576, %v576
        %v579 = vadd.f32 %v551, %v577
        %v580 = vadd.f32 %v552, %v578
        %v581 = vmul.f32 %v579, -0.25
        %v582 = vmul.f32 %v580, -0.25
        %v583 = vmul.f32 %v581, 1.442695
        %v584 = vpow.pop %v583
        %v585 = vmul.f32 %v582, 1.442695
        %v586 = vpow.pop %v585
        %vm587 = vcmask 64512
        %v589 = vsel %vm587, %v524, 0
        %591 = vmatprep.subr.mxu0 %v586
        %592 = vmatpush1.msra.mxu0 %v584
        %593 = vmatprep.subr.mxu0 0.0
        %594 = vmatpush1.msra.mxu0 0.0
        %595 = vmatprep.subr.mxu0 0.0
        %596 = vmatpush1.msra.mxu0 0.0
        %597 = vmatprep.subr.mxu0 0.0
        %598 = vmatpush1.msra.mxu0 0.0
        %599 = vmatprep.subr.mxu0 0.0
        %600 = vmatpush1.msra.mxu0 0.0
        %601 = vmatprep.subr.mxu0 0.0
        %602 = vmatpush1.msra.mxu0 0.0
        %603 = vmatprep.subr.mxu0 0.0
        %604 = vmatpush1.msra.mxu0 0.0
        %605 = vmatprep.subr.mxu0 0.0
        %606 = vmatpush1.msra.mxu0 0.0
        %607 = vmatprep.subr.mxu0 0.0
        %608 = vmatpush1.msra.mxu0 0.0
        %609 = vmatprep.subr.mxu0 0.0
        %610 = vmatpush1.msra.mxu0 0.0
        %611 = vmatprep.subr.mxu0 0.0
        %612 = vmatpush1.msra.mxu0 0.0
        %613 = vmatprep.subr.mxu0 0.0
        %614 = vmatpush1.msra.mxu0 0.0
        %615 = vmatprep.subr.mxu0 0.0
        %616 = vmatpush1.msra.mxu0 0.0
        %617 = vmatprep.subr.mxu0 0.0
        %618 = vmatpush1.msra.mxu0 0.0
        %619 = vmatprep.subr.mxu0 0.0
        %620 = vmatpush1.msra.mxu0 0.0
        %621 = vmatprep.subr.mxu0 0.0
        %622 = vmatpush1.msra.mxu0 0.0
        %623 = vmatprep.subr.mxu0 0.0
        %624 = vmatpush1.msra.mxu0 0.0
        %625 = vmatprep.subr.mxu0 0.0
        %626 = vmatpush1.msra.mxu0 0.0
        %627 = vmatprep.subr.mxu0 0.0
        %628 = vmatpush1.msra.mxu0 0.0
        %629 = vmatprep.subr.mxu0 0.0
        %630 = vmatpush1.msra.mxu0 0.0
        %631 = vmatprep.subr.mxu0 0.0
        %632 = vmatpush1.msra.mxu0 0.0
        %633 = vmatprep.subr.mxu0 0.0
        %634 = vmatpush1.msra.mxu0 0.0
        %635 = vmatprep.subr.mxu0 0.0
        %636 = vmatpush1.msra.mxu0 0.0
        %637 = vmatprep.subr.mxu0 0.0
        %638 = vmatpush1.msra.mxu0 0.0
        %639 = vmatprep.subr.mxu0 0.0
        %640 = vmatpush1.msra.mxu0 0.0
        %641 = vmatprep.subr.mxu0 0.0
        %642 = vmatpush1.msra.mxu0 0.0
        %643 = vmatprep.subr.mxu0 0.0
        %644 = vmatpush1.msra.mxu0 0.0
        %645 = vmatprep.subr.mxu0 0.0
        %646 = vmatpush1.msra.mxu0 0.0
        %647 = vmatprep.subr.mxu0 0.0
        %648 = vmatpush1.msra.mxu0 0.0
        %649 = vmatprep.subr.mxu0 0.0
        %650 = vmatpush1.msra.mxu0 0.0
        %651 = vmatprep.subr.mxu0 0.0
        %652 = vmatpush1.msra.mxu0 0.0
        %653 = vmatprep.subr.mxu0 0.0
        %654 = vmatpush1.msra.mxu0 0.0
        %655 = vmatprep.mubr.f32.mxu0 0.0
        %656 = vmatmul.mubr.f32.gmra.mrb[0].mxu0 %v589
        %v657 = vpop.f32.mrb[0].mxu0
        %v658 = vadd.f32 0.0, %v657
        %v659 = vpop.f32.mrb[0].mxu0
        %v660 = vadd.f32 0.0, %v659
        %661 = vdwg.mxu0
        %v663 = vlaneseq
        %v664 = vshrl.u32 %v663, 7
        %v665 = vsub.s32 0, %v664
        %v666 = vrot.slane %v522, %v665
        %v667 = vlaneseq
        %v668 = vshrl.u32 %v667, 7
        %v669 = vsub.s32 1, %v668
        %v670 = vrot.slane %v522, %v669
        %v673 = vmul.f32 %v584, %v666
        %v674 = vmul.f32 %v586, %v670
        %v675 = vand.u32 2147483647, %v584
        %v676 = vand.u32 2147483647, %v586
        %v677 = vand.u32 2147483647, %v673
        %v678 = vand.u32 2147483647, %v674
        %vm679 = vcmp.lt.f32.partialorder %v675, 1e+30
        %vm680 = vcmp.lt.f32.partialorder %v676, 1e+30
        %vm681 = vcmp.lt.f32.partialorder %v677, 1e+30
        %vm682 = vcmp.lt.f32.partialorder %v678, 1e+30
        %v683 = vsel %vm679, %v584, 0.0
        %v684 = vsel %vm680, %v586, 0.0
        %v685 = vsel %vm681, %v673, 0.0
        %v686 = vsel %vm682, %v674, 0.0
        %vm687 = vcmask 793600
        %v689 = vsel %vm687, %v684, 0
        %v692 = vsel %vm687, %v686, 0
        %vm694 = vcmask 1040384
        %v696 = vsel %vm694, %v519, 0
        %v699 = vsel %vm694, %v520, 0
        %701 = vmatprep.subr.mxu0 %v464
        %702 = vmatpush1.msra.mxu0 %v463
        %703 = vmatprep.subr.mxu0 %v466
        %704 = vmatpush1.msra.mxu0 %v465
        %705 = vmatprep.subr.mxu0 %v468
        %706 = vmatpush1.msra.mxu0 %v467
        %707 = vmatprep.subr.mxu0 %v470
        %708 = vmatpush1.msra.mxu0 %v469
        %709 = vmatprep.subr.mxu0 %v472
        %710 = vmatpush1.msra.mxu0 %v471
        %711 = vmatprep.subr.mxu0 %v474
        %712 = vmatpush1.msra.mxu0 %v473
        %713 = vmatprep.subr.mxu0 %v476
        %714 = vmatpush1.msra.mxu0 %v475
        %715 = vmatprep.subr.mxu0 %v478
        %716 = vmatpush1.msra.mxu0 %v477
        %717 = vmatprep.subr.mxu0 %v480
        %718 = vmatpush1.msra.mxu0 %v479
        %719 = vmatprep.subr.mxu0 %v482
        %720 = vmatpush1.msra.mxu0 %v481
        %721 = vmatprep.subr.mxu0 %v484
        %722 = vmatpush1.msra.mxu0 %v483
        %723 = vmatprep.subr.mxu0 %v486
        %724 = vmatpush1.msra.mxu0 %v485
        %725 = vmatprep.subr.mxu0 %v488
        %726 = vmatpush1.msra.mxu0 %v487
        %727 = vmatprep.subr.mxu0 %v490
        %728 = vmatpush1.msra.mxu0 %v489
        %729 = vmatprep.subr.mxu0 %v492
        %730 = vmatpush1.msra.mxu0 %v491
        %731 = vmatprep.subr.mxu0 %v494
        %732 = vmatpush1.msra.mxu0 %v493
        %733 = vmatprep.subr.mxu0 %v496
        %734 = vmatpush1.msra.mxu0 %v495
        %735 = vmatprep.subr.mxu0 %v498
        %736 = vmatpush1.msra.mxu0 %v497
        %737 = vmatprep.subr.mxu0 %v500
        %738 = vmatpush1.msra.mxu0 %v499
        %739 = vmatprep.subr.mxu0 %v502
        %740 = vmatpush1.msra.mxu0 %v501
        %741 = vmatprep.subr.mxu0 %v504
        %742 = vmatpush1.msra.mxu0 %v503
        %743 = vmatprep.subr.mxu0 %v506
        %744 = vmatpush1.msra.mxu0 %v505
        %745 = vmatprep.subr.mxu0 %v508
        %746 = vmatpush1.msra.mxu0 %v507
        %747 = vmatprep.subr.mxu0 %v510
        %748 = vmatpush1.msra.mxu0 %v509
        %749 = vmatprep.subr.mxu0 %v512
        %750 = vmatpush1.msra.mxu0 %v511
        %751 = vmatprep.subr.mxu0 %v514
        %752 = vmatpush1.msra.mxu0 %v513
        %753 = vmatprep.subr.mxu0 %v516
        %754 = vmatpush1.msra.mxu0 %v515
        %755 = vmatprep.subr.mxu0 %v518
        %756 = vmatpush1.msra.mxu0 %v517
        %757 = vmatprep.subr.mxu0 %v699
        %758 = vmatpush1.msra.mxu0 %v696
        %759 = vmatprep.subr.mxu0 0.0
        %760 = vmatpush1.msra.mxu0 0.0
        %761 = vmatprep.subr.mxu0 0.0
        %762 = vmatpush1.msra.mxu0 0.0
        %763 = vmatprep.subr.mxu0 0.0
        %764 = vmatpush1.msra.mxu0 0.0
        %765 = vmatprep.mubr.f32.mxu0 %v689
        %766 = vmatmul.mubr.f32.gmra.mrb[0].mxu0 %v683
        %v767 = vpop.f32.mrb[0].mxu0
        %v768 = vadd.f32 0.0, %v767
        %v769 = vpop.f32.mrb[0].mxu0
        %v770 = vadd.f32 0.0, %v769
        %771 = vmatprep.mubr.f32.mxu0 %v692
        %772 = vmatmul.mubr.f32.gmra.mrb[0].mxu0 %v685
        %v773 = vpop.f32.mrb[0].mxu0
        %v774 = vadd.f32 0.0, %v773
        %v775 = vpop.f32.mrb[0].mxu0
        %v776 = vadd.f32 0.0, %v775
        %777 = vdwg.mxu0
        %v778 = vmul.f32 %v658, %v768
        %v779 = vmul.f32 %v660, %v770
        %v780 = vrot.slane %v778, 4
        %v781 = vadd.f32 %v778, %v780
        %v782 = vrot.slane %v781, 2
        %v783 = vadd.f32 %v781, %v782
        %v784 = vrot.slane %v783, 1
        %v785 = vadd.f32 %v783, %v784
        %v786 = vsel %vm687, %v779, 0.0
        %v787 = vrot.slane %v786, 4
        %v788 = vadd.f32 %v786, %v787
        %v789 = vrot.slane %v788, 2
        %v790 = vadd.f32 %v788, %v789
        %v791 = vrot.slane %v790, 1
        %v792 = vadd.f32 %v790, %v791
        %v793 = vmul.f32 %v658, %v774
        %v794 = vmul.f32 %v660, %v776
        %v795 = vrot.slane %v793, 4
        %v796 = vadd.f32 %v793, %v795
        %v797 = vrot.slane %v796, 2
        %v798 = vadd.f32 %v796, %v797
        %v799 = vrot.slane %v798, 1
        %v800 = vadd.f32 %v798, %v799
        %v801 = vsel %vm687, %v794, 0.0
        %v802 = vrot.slane %v801, 4
        %v803 = vadd.f32 %v801, %v802
        %v804 = vrot.slane %v803, 2
        %v805 = vadd.f32 %v803, %v804
        %v806 = vrot.slane %v805, 1
        %v807 = vadd.f32 %v805, %v806
        %v808 = vrcp.pop %v785
        %v809 = vrcp.pop %v792
        %v810 = vmul.f32 %v785, %v808
        %v811 = vmul.f32 %v792, %v809
        %v812 = vsub.f32 2.0, %v810
        %v813 = vsub.f32 2.0, %v811
        %v814 = vmul.f32 %v808, %v812
        %v815 = vmul.f32 %v809, %v813
        %v816 = vmul.f32 %v800, %v814
        %v817 = vmul.f32 %v807, %v815
        %v820 = vcombine.low %v816, %v817
        %v822 = vunpack.c.l.s4 1966171168
        %v823 = vunpack.c.0.s8 %v822
        %v824 = vlaneseq
        %v825 = vshrl.u32 %v824, 7
        %v826 = vsub.s32 %v823, %v825
        %v827 = vrot.slane %v820, %v826
        %v829 = vunpack.c.l.s4 1966171168
        %v830 = vunpack.c.0.s8 %v829
        %v831 = vlaneseq
        %v832 = vshrl.u32 %v831, 7
        %v833 = vsub.s32 %v830, %v832
        %v834 = vrot.slane %v827, %v833
        %v836 = vlaneseq
        %vm837 = vcmp.ge.s32.totalorder %v836, 0
        %vm838 = vcmp.lt.s32.totalorder %v836, 225
        %vm839 = vmand %vm837, %vm838
        %840 = vst.msk [vmem:[%s271] sm:$0x3] %vm839, %v834
        %s841 = sand.u32 %s153, 1
        %s842 = scalar_lea.sflag [#allocation4], %s841
        %s843 = sand.u32 %s153, 1
        %s844 = smul.addr %s843, 2
        %s845 = scalar_lea.vmem [#allocation5], %s844
        // Predicated region
        $region45: #{tpu_custom_call.1} parent=39 // pred_check
          %p846 = pneg %p163
        $region46: #{tpu_custom_call.1} parent=39 // pred_check_branch
          %848 = sbr.rel (%p846) target = $region48
        $region47: #{tpu_custom_call.1} parent=39 // pred_region
          %s850 = ssub.s32 32, 32
          %851 = vsyncadd %s842, %s850
          %s852 = smul.addr %s20, 2
          %s853 = smul.addr %s852, 16
          %s854 = scalar_lea.hbm %s5, %s853
          %s856 = sshll.u32 %s845, 4
          %s857 = int_to_ptr.vmem [resolvable:$true] %s856
          %859 = dma.vmem_to_hbm [thread:$0]  %s857, 32, %s854, %s842
        $region48: #{tpu_custom_call.1} parent=39 // pred_fallthru
          _
      $region40: #{tpu_custom_call.1} parent=5 // pred_fallthru
        _
      %p860 = scmp.le.s32.totalorder 2, %s15
      // Predicated region
      $region49: #{tpu_custom_call.1} parent=5 // pred_check
        %p861 = pneg %p860
      $region50: #{tpu_custom_call.1} parent=5 // pred_check_branch
        %863 = sbr.rel (%p861) target = $region52
      $region51: #{tpu_custom_call.1} parent=5 // pred_region
        %s864 = ssub.s32 %s15, 2
        // Predicated region
        $region53: #{tpu_custom_call.1} parent=51 // pred_check
          %p865 = pneg %p169
        $region54: #{tpu_custom_call.1} parent=51 // pred_check_branch
          %867 = sbr.rel (%p865) target = $region56
        $region55: #{tpu_custom_call.1} parent=51 // pred_region
          %s868 = sand.u32 %s154, 1
          %s869 = scalar_lea.sflag [#allocation4], %s868
          %s870 = sand.u32 %s154, 1
          %s871 = smul.addr %s870, 2
          %s872 = scalar_lea.vmem [#allocation5], %s871
          %873 = dma.done %s869, 32
        $region56: #{tpu_custom_call.1} parent=51 // pred_fallthru
          _
      $region52: #{tpu_custom_call.1} parent=5 // pred_fallthru
        _
    $region6: #{tpu_custom_call.1} parent=1 // loop_footer
      %s19 = sadd.s32 1, %s15
    $region7: #{tpu_custom_call.1} parent=1 // loop_footer_branch
      %14 = sbr.rel target = $region3
    $region8: #{tpu_custom_call.1} parent=1 // loop_exit
      _
    %874 = vsyncpa [#allocation3], 1
    %s875 = scalar_lea.sflag [#allocation3], 1
    %876 = vsyncpa %s875, 1
    %877 = vsyncpa [#allocation4], 1
    %s878 = scalar_lea.sflag [#allocation4], 1
    %879 = vsyncpa %s878, 1

</llo_original>
